<compile_context>
chip_gen: v7x
topology: tpu7x:2x2x1
jax: 0.10.0
libtpu: 0.0.40
codegen_flags: <defaults>
</compile_context>

<pallas_src>
import functools

import jax
import jax.numpy as jnp
import numpy as np
from jax.experimental import pallas as pl
from jax.experimental.pallas import tpu as pltpu

_LANE = 128
_MAX_WIDTH = 4096
_MIN_PALLAS_BYTES = 1 * 1024 * 1024          # below this, plain XLA multiply
_KERNEL_DTYPES = (jnp.float32, jnp.bfloat16)  # float dtypes routed to the kernel


def _scale_kernel(scale_ref, x_ref, o_ref):
    # scale_ref: (1,) f32 in SMEM; x_ref / o_ref: VMEM tiles (2-D or 1-D blocks).
    # Multiply in f32 (a no-op cast for f32 inputs). The op is HBM-bound, so the
    # extra bf16<->f32 vector casts are fully hidden under the DMA; keeping the
    # scalar in f32 avoids any reliance on sub-32-bit scalar lowering.
    o_ref[...] = (x_ref[...].astype(jnp.float32) * scale_ref[0]).astype(o_ref.dtype)


def _min_sublanes(dtype) -> int:
    # dtype-aware sublane granularity: 8 for 4-byte, 16 for 2-byte, 32 for 1-byte.
    return max(8, 32 // jnp.dtype(dtype).itemsize)


@functools.lru_cache(maxsize=None)
def _target_block_bytes() -> int:
    """Per-buffer block size: generation-aware, capped at 8 MiB."""
    vmem = 64 * 1024 * 1024  # v7x per-TC VMEM (smallest current generation)
    try:
        info = pltpu.get_tpu_info()
        vmem = int(getattr(info, "vmem_capacity_bytes", vmem)) or vmem
    except Exception:
        pass
    # 4 blocks live at once (in + out, each double-buffered); keep them <= vmem/2.
    cap = max(512 * 1024, (vmem // 8) // (512 * 1024) * (512 * 1024))
    return min(8 * 1024 * 1024, cap)


def _vmem_limit_bytes(block_bytes: int) -> int:
    # in + out double-buffered = 4 live blocks, plus headroom; <= 48 MiB (v7x safe).
    return min(48 * 1024 * 1024, 4 * block_bytes + 8 * 1024 * 1024)


def _pick_layout_2d(n: int, dtype):
    """Lane-dense (rows, width) view; None if no 128-multiple width divides n."""
    width = None
    for w in range(_MAX_WIDTH, _LANE - 1, -_LANE):
        if n % w == 0:
            width = w
            break
    if width is None:
        return None
    itemsize = jnp.dtype(dtype).itemsize
    sub = _min_sublanes(dtype)
    rows = n // width
    block_rows = max(sub, (_target_block_bytes() // (width * itemsize)) // sub * sub)
    if rows <= block_rows:
        if rows >= 2 * sub:
            # Keep >= 2 grid steps so v7x can shard the parallel axis over 2 TCs.
            block_rows = pl.cdiv(pl.cdiv(rows, 2), sub) * sub
        else:
            block_rows = rows  # full-dim block (allowed even if < min sublanes)
    return width, rows, block_rows


def _pick_block_1d(n: int, dtype) -> int:
    """Block length for the ragged 1-D path (multiple of 128; Pallas masks the
    partial last block). Conservative ~1 MiB data blocks for the rank-1 layout."""
    if n <= _LANE:
        return n  # single full-extent block
    itemsize = jnp.dtype(dtype).itemsize
    target = max(_LANE, (1024 * 1024 // itemsize) // _LANE * _LANE)
    half = pl.cdiv(pl.cdiv(n, 2), _LANE) * _LANE  # keep >= 2 grid steps if possible
    return max(_LANE, min(half, target))


def _scale_pallas_call(factor, mat, block_shape, index_map, donate_x):
    itemsize = jnp.dtype(mat.dtype).itemsize
    block_bytes = int(np.prod(block_shape)) * itemsize
    grid = (pl.cdiv(mat.shape[0], block_shape[0]),)
    cost = pl.CostEstimate(
        flops=mat.size,
        transcendentals=0,
        bytes_accessed=2 * mat.size * itemsize,
    )
    return pl.pallas_call(
        _scale_kernel,
        out_shape=jax.ShapeDtypeStruct(mat.shape, mat.dtype),
        grid_spec=pltpu.PrefetchScalarGridSpec(
            num_scalar_prefetch=0,
            grid=grid,
            in_specs=[
                pl.BlockSpec(memory_space=pltpu.MemorySpace.SMEM),  # (1,) f32 scale
                pl.BlockSpec(block_shape, index_map),
            ],
            out_specs=pl.BlockSpec(block_shape, index_map),
        ),
        compiler_params=pltpu.CompilerParams(
            dimension_semantics=("parallel",),
            vmem_limit_bytes=_vmem_limit_bytes(block_bytes),
        ),
        cost_estimate=cost,
        input_output_aliases=({1: 0} if donate_x else {}),
    )(factor, mat)


def scale_factor_forward(x: jax.Array, scale_factor, *, fitted=None,
                         donate_x: bool = False,
                         min_pallas_bytes: int = _MIN_PALLAS_BYTES) -> jax.Array:
    """Pallas equivalent of ScaleFactor.forward(x).

    fitted:   optional host-side hint mirroring `module.fitted`. False => identity
              with zero device work even if the scale lives on device.
    donate_x: alias x's HBM buffer as the output (halves peak HBM footprint).
    """
    if x.size == 0:
        return x
    if fitted is False:
        return x

    # ---- resolve the scale into a scalar (statically if possible) ------------
    static_scale = None
    if isinstance(scale_factor, (int, float, np.floating, np.integer)):
        static_scale = float(scale_factor)
    elif isinstance(scale_factor, np.ndarray) and np.ndim(scale_factor) == 0:
        static_scale = float(scale_factor)

    if static_scale is not None:
        if static_scale == 0.0:
            return x  # unfitted -> identity, completely free
        factor_scalar = jnp.asarray(static_scale, dtype=jnp.float32)
    else:
        s = jnp.asarray(scale_factor, dtype=jnp.float32).reshape(())
        if fitted is True:
            factor_scalar = s
        else:
            # Fold the "fitted" check into one scalar select so the kernel body
            # stays a bare multiply (unfitted traced scales multiply by 1.0).
            factor_scalar = jnp.where(s != 0.0, s, jnp.float32(1.0))

    # ---- non-kernel fast paths -------------------------------------------------
    if x.dtype not in _KERNEL_DTYPES:
        # TODO(synk): integer / other dtypes take the plain-XLA path; promotion
        # follows JAX rules (close to, not identical with, torch's 0-dim rules).
        return x * factor_scalar
    if x.nbytes < min_pallas_bytes:
        # Tiny tensors: XLA's fused multiply is already at roofline; skip the
        # pallas_call launch / single-step pipeline fixed cost.
        return x * factor_scalar.astype(x.dtype)

    factor = factor_scalar.reshape(1)  # (1,) f32 for SMEM
    orig_shape = x.shape
    n = x.size

    layout = _pick_layout_2d(n, x.dtype)
    if layout is not None:
        width, rows, block_rows = layout
        mat = x.reshape(rows, width)  # free for contiguous row-major inputs
        out = _scale_pallas_call(factor, mat, (block_rows, width),
                                 lambda i: (i, 0), donate_x)
    else:
        # Ragged element count: 1-D blocked kernel. Pallas masks the partial
        # last block, so there is no pad / slice HBM round trip.
        flat = x.reshape(-1)
        block = _pick_block_1d(n, x.dtype)
        out = _scale_pallas_call(factor, flat, (block,),
                                 lambda i: (i,), donate_x)
    return out.reshape(orig_shape)


# TODO(synk): the fit-time `_observe` variance accumulation, fit_()/set_()/reset_()
# host-side state, index_fn callback and state-dict consistency hooks are Python
# bookkeeping in the PyTorch module and are intentionally not implemented here.


if __name__ == "__main__":
    key = jax.random.PRNGKey(0)
    x = jax.random.normal(key, (2, 4, 16, 16), dtype=jnp.float32)  # NCHW-style

    # 1) Unfitted module (scale_factor == 0.0): static identity short-circuit.
    y = jax.block_until_ready(scale_factor_forward(x, 0.0))
    np.testing.assert_allclose(np.asarray(y), np.asarray(x), rtol=1e-6, atol=1e-6)

    # 2) Fitted module, small tensor (plain-XLA fast path).
    scale = 0.57
    y = jax.block_until_ready(scale_factor_forward(x, scale))
    np.testing.assert_allclose(np.asarray(y), np.asarray(x) * np.float32(scale),
                               rtol=1e-6, atol=1e-6)

    # 3) Same small tensor, Pallas path forced (single full-dim (1, 2048) block).
    y = jax.block_until_ready(scale_factor_forward(x, scale, min_pallas_bytes=0))
    np.testing.assert_allclose(np.asarray(y), np.asarray(x) * np.float32(scale),
                               rtol=1e-6, atol=1e-6)

    # 4) Device-scalar scale == 0.0 (traced "fitted" select -> multiply by 1.0).
    y = jax.block_until_ready(
        scale_factor_forward(x, jnp.asarray(0.0, dtype=jnp.float32), min_pallas_bytes=0))
    np.testing.assert_allclose(np.asarray(y), np.asarray(x), rtol=1e-6, atol=1e-6)

    # 5) Larger tensor: multi-step 2-D grid (2 blocks of (64, 4096) f32).
    x_big = jax.random.normal(jax.random.PRNGKey(1), (8, 64, 32, 32), dtype=jnp.float32)
    y_big = jax.block_until_ready(scale_factor_forward(x_big, scale))
    np.testing.assert_allclose(np.asarray(y_big),
                               np.asarray(x_big) * np.float32(scale),
                               rtol=1e-6, atol=1e-6)

    # 6) bf16 input through the kernel (dtype-aware sublane tiling).
    x_bf16 = x_big.astype(jnp.bfloat16)
    y_bf16 = jax.block_until_ready(scale_factor_forward(x_bf16, scale))
    np.testing.assert_allclose(
        np.asarray(y_bf16, dtype=np.float32),
        np.asarray(x_bf16, dtype=np.float32) * np.float32(scale),
        rtol=1e-2, atol=1e-2)

    # 7) Ragged element count (7*13*11 = 1001): 1-D path, masked partial last block.
    x_rag = jax.random.normal(jax.random.PRNGKey(2), (7, 13, 11), dtype=jnp.float32)
    y_rag = jax.block_until_ready(scale_factor_forward(x_rag, scale, min_pallas_bytes=0))
    np.testing.assert_allclose(np.asarray(y_rag),
                               np.asarray(x_rag) * np.float32(scale),
                               rtol=1e-6, atol=1e-6)

    # 8) Host-side "unfitted" hint with a device scale: no device work at all.
    y = jax.block_until_ready(
        scale_factor_forward(x, jnp.asarray(0.0, dtype=jnp.float32), fitted=False))
    np.testing.assert_allclose(np.asarray(y), np.asarray(x), rtol=1e-6, atol=1e-6)

    print("KERNEL_OK")
</pallas_src>

<mosaic_0001>
module attributes {stable_mosaic.version = 11 : i64} {
  func.func @_scale_kernel(%arg0: i32, %arg1: memref<1xf32, #tpu.memory_space<smem>>, %arg2: memref<1x2048xf32, #tpu.memory_space<vmem>>, %arg3: memref<1x2048xf32, #tpu.memory_space<vmem>>) attributes {dimension_semantics = [#tpu.dimension_semantics<parallel>], iteration_bounds = array<i64: 1>, scalar_prefetch = 0 : i64, scratch_operands = 0 : i64, tpu.core_type = #tpu.core_type<tc>, window_params = [{transform_indices = @transform_0, window_bounds = array<i64: 1>}, {transform_indices = @transform_1, window_bounds = array<i64: 1, 2048>}, {transform_indices = @transform_2, window_bounds = array<i64: 1, 2048>}]} {
    %c0 = arith.constant 0 : index
    %c0_0 = arith.constant 0 : index
    %0 = vector.load %arg2[%c0, %c0_0] : memref<1x2048xf32, #tpu.memory_space<vmem>>, vector<1x2048xf32>
    %c0_1 = arith.constant 0 : index
    %1 = memref.load %arg1[%c0_1] : memref<1xf32, #tpu.memory_space<smem>>
    %2 = vector.broadcast %1 : f32 to vector<1x2048xf32>
    %3 = arith.mulf %0, %2 : vector<1x2048xf32>
    %c0_2 = arith.constant 0 : index
    %c0_3 = arith.constant 0 : index
    %4 = vector.load %arg3[%c0_2, %c0_3] : memref<1x2048xf32, #tpu.memory_space<vmem>>, vector<1x2048xf32>
    tpu.vector_store %arg3[%c0_2, %c0_3], %3 {strides = array<i32>} : memref<1x2048xf32, #tpu.memory_space<vmem>>, vector<1x2048xf32>,
    return
  }
  func.func @transform_0(%arg0: i32) -> i32 {
    %c0_i32 = arith.constant 0 : i32
    %c0_i32_0 = arith.constant 0 : i32
    return %c0_i32 : i32
  }
  func.func @transform_1(%arg0: i32) -> (i32, i32) {
    %c0_i32 = arith.constant 0 : i32
    %c0_i32_0 = arith.constant 0 : i32
    return %arg0, %c0_i32 : i32, i32
  }
  func.func @transform_2(%arg0: i32) -> (i32, i32) {
    %c0_i32 = arith.constant 0 : i32
    %c0_i32_0 = arith.constant 0 : i32
    return %arg0, %c0_i32 : i32, i32
  }
}

</mosaic_0001>

<llo_original>
// kernel: tpu_custom_call.1
$region0: #{tpu_custom_call.1}
  #allocation0 [shape = 'u32[]', space=smem, size = 0x4, offset = 0x4, fixed_abs, tag = 'smem constant byte address 0x4 - core index']
  #allocation1 [shape = 'u32[144,128]{1,0:T(1,128)}', space=vmem, size = 0x12000, scoped, tag = 'internal scratch']
  #allocation2 [shape = 'f32[1]{0:T(128)S(6)}', space=smem, size = 0x200, scoped, tag = 'scoped memory for tpu_custom_call.1']
  %s0 = inlined_call_operand.<no memory space> [shape: f32[1], index: 0, kind: input, shape index: {}]
  %s1 = inlined_call_operand.hbm [shape: f32[1,2048], index: 1, kind: input, shape index: {}]
  %s2 = inlined_call_operand.hbm [shape: f32[1,2048], index: 2, kind: output, shape index: {}]
  %s3 = sld [smem:[#allocation0]]
  $region22: #{tpu_custom_call.1} parent=0
    _
  %s5 = ssub.s32 1, %s3
  %s6 = scalar_select 0, %s5, %s3
  %7 = sst [smem:[#allocation2]] %s0
  $region1: #{tpu_custom_call.1} parent=0
    #allocation3 [shape = 'u8[8192]{0}', space=vmem, size = 0x2000, scoped, tag = 'input window, operand 1, single buffered']
    #allocation4 [shape = 's32[1]{0}', space=sflag, size = 0x4, scoped, tag = 'scoped memory for tpu_custom_call.1']
    #allocation5 [shape = 's32[1]{0}', space=sflag, size = 0x4, scoped, tag = 'scoped memory for tpu_custom_call.1']
    #allocation6 [shape = 'u8[8192]{0}', space=vmem, size = 0x2000, scoped, tag = 'output window, operand 0, single buffered']
    %8 = vsyncpa [#allocation4], 0
    %9 = vsyncpa [#allocation5], 0
    // Predicated region
    $region2: #{tpu_custom_call.1} parent=1 // pred_check
      _
    $region3: #{tpu_custom_call.1} parent=1 // pred_check_branch
      %11 = sbr.rel (0) target = $region5
    $region4: #{tpu_custom_call.1} parent=1 // pred_region
      _
    $region5: #{tpu_custom_call.1} parent=1 // pred_fallthru
      _
    // Predicated region
    $region6: #{tpu_custom_call.1} parent=1 // pred_check
      _
    $region7: #{tpu_custom_call.1} parent=1 // pred_check_branch
      %13 = sbr.rel (0) target = $region9
    $region8: #{tpu_custom_call.1} parent=1 // pred_region
      %s15 = ssub.s32 256, 256
      %16 = vsyncadd [#allocation4], %s15
      %s18 = sshll.u32 [#allocation3], 4
      %s19 = int_to_ptr.vmem [resolvable:$true] %s18
      %21 = dma.hbm_to_vmem [thread:$0]  %s1, 256, %s19, [#allocation4]
    $region9: #{tpu_custom_call.1} parent=1 // pred_fallthru
      _
    // Predicated region
    $region10: #{tpu_custom_call.1} parent=1 // pred_check
      _
    $region11: #{tpu_custom_call.1} parent=1 // pred_check_branch
      %23 = sbr.rel (0) target = $region13
    $region12: #{tpu_custom_call.1} parent=1 // pred_region
      %24 = dma.done [#allocation4], 256
    $region13: #{tpu_custom_call.1} parent=1 // pred_fallthru
      _
    %v25 = vld [vmem:[#allocation3] sm:$0xff]
    %v26 = vld [vmem:[#allocation3 + $0x8] sm:$0xff]
    %s27 = sld [smem:[#allocation2]]
    %v28 = vstv %s27
    %v29 = vmul.f32 %v25, %v28
    %v30 = vmul.f32 %v26, %v28
    %31 = vst [vmem:[#allocation6] sm:$0xff] %v29
    %32 = vst [vmem:[#allocation6 + $0x8] sm:$0xff] %v30
    // Predicated region
    $region14: #{tpu_custom_call.1} parent=1 // pred_check
      _
    $region15: #{tpu_custom_call.1} parent=1 // pred_check_branch
      %34 = sbr.rel (0) target = $region17
    $region16: #{tpu_custom_call.1} parent=1 // pred_region
      %s36 = ssub.s32 256, 256
      %37 = vsyncadd [#allocation5], %s36
      %s39 = sshll.u32 [#allocation6], 4
      %s40 = int_to_ptr.vmem [resolvable:$true] %s39
      %42 = dma.vmem_to_hbm [thread:$0]  %s40, 256, %s2, [#allocation5]
    $region17: #{tpu_custom_call.1} parent=1 // pred_fallthru
      _
    // Predicated region
    $region18: #{tpu_custom_call.1} parent=1 // pred_check
      _
    $region19: #{tpu_custom_call.1} parent=1 // pred_check_branch
      %44 = sbr.rel (0) target = $region21
    $region20: #{tpu_custom_call.1} parent=1 // pred_region
      %45 = dma.done [#allocation5], 256
    $region21: #{tpu_custom_call.1} parent=1 // pred_fallthru
      _
    %46 = vsyncpa [#allocation4], 1
    %47 = vsyncpa [#allocation5], 1

</llo_original>
